<compile_context>
chip_gen: v5e
topology: v5e:2x2
jax: 0.10.0
libtpu: 0.0.40
codegen_flags: <defaults>
</compile_context>

<pallas_src>
import functools

import jax
import jax.numpy as jnp
import numpy as np
from jax import lax
from jax.experimental import pallas as pl
from jax.experimental.pallas import tpu as pltpu


def _round_up(n, m):
    return (n + m - 1) // m * m


def _ln_residual_math(x_ref, w_ref, b_ref, g_ref, beta_ref, o_ref, *,
                      eps, p, drop_threshold, seed_ref):
    x_f32 = x_ref[...].astype(jnp.float32)

    # sublayer(x): Linear(D -> D) on the MXU.  Operand dtype = w_ref.dtype
    # (bf16 when requested); accumulation always f32.
    sub = jnp.dot(x_ref[...].astype(w_ref.dtype), w_ref[...],
                  preferred_element_type=jnp.float32)
    sub = sub + b_ref[...].astype(jnp.float32)

    # LayerNorm over the feature axis (biased variance, like nn.LayerNorm).
    mean = jnp.mean(sub, axis=-1, keepdims=True)
    centered = sub - mean
    var = jnp.mean(centered * centered, axis=-1, keepdims=True)
    ln = centered * lax.rsqrt(var + eps)
    ln = ln * g_ref[...].astype(jnp.float32) + beta_ref[...].astype(jnp.float32)

    if seed_ref is not None:
        # Per-tile salt so each row tile draws an independent dropout mask.
        pltpu.prng_seed(seed_ref[0] + pl.program_id(0))
        bits = pltpu.bitcast(pltpu.prng_random_bits(ln.shape), jnp.uint32)
        keep = bits >= jnp.uint32(drop_threshold)          # drop with prob p
        ln = jnp.where(keep, ln * (1.0 / (1.0 - p)), 0.0)

    o_ref[...] = (x_f32 + ln).astype(o_ref.dtype)


def _kernel_eval(x_ref, w_ref, b_ref, g_ref, beta_ref, o_ref, *, eps):
    _ln_residual_math(x_ref, w_ref, b_ref, g_ref, beta_ref, o_ref,
                      eps=eps, p=0.0, drop_threshold=0, seed_ref=None)


def _kernel_train(seed_ref, x_ref, w_ref, b_ref, g_ref, beta_ref, o_ref, *,
                  eps, p, drop_threshold):
    _ln_residual_math(x_ref, w_ref, b_ref, g_ref, beta_ref, o_ref,
                      eps=eps, p=p, drop_threshold=drop_threshold,
                      seed_ref=seed_ref)


def residual_connection_layer_norm(x, w, b, gamma, beta, *,
                                   p=0.1, training=False, seed=0, eps=1e-5,
                                   tile_m=512, mxu_dtype=None):
    """x: (B, S, D). Returns x + dropout(LayerNorm(x @ w + b)), dtype of x."""
    B, S, D = x.shape
    M = B * S
    xf = x.reshape(M, D)

    # Row tile: multiple of 8 (f32 sublane), large enough to hide DMA yet
    # small enough that double-buffered tiles + the weight fit v7x's VMEM.
    tm = max(8, min(_round_up(M, 8), (tile_m // 8) * 8))
    m_pad = _round_up(M, tm)
    if m_pad != M:
        xf = jnp.pad(xf, ((0, m_pad - M), (0, 0)))
    grid = (m_pad // tm,)

    if mxu_dtype is not None:
        w = w.astype(mxu_dtype)

    use_dropout = bool(training) and p > 0.0
    n_prefetch = 1 if use_dropout else 0

    def row_map(i, *_):       # x / out: tile i of the row dimension
        return (i, 0)

    def const_map(i, *_):     # params: same block every step (VMEM-resident)
        return (0, 0)

    in_specs = [
        pl.BlockSpec((tm, D), row_map),       # x
        pl.BlockSpec((D, D), const_map),      # W
        pl.BlockSpec((1, D), const_map),      # b
        pl.BlockSpec((1, D), const_map),      # gamma
        pl.BlockSpec((1, D), const_map),      # beta
    ]
    out_spec = pl.BlockSpec((tm, D), row_map)

    if use_dropout:
        drop_threshold = min(int(round(p * 4294967296.0)), 4294967295)
        kernel = functools.partial(_kernel_train, eps=eps, p=p,
                                   drop_threshold=drop_threshold)
    else:
        kernel = functools.partial(_kernel_eval, eps=eps)

    grid_spec = pltpu.PrefetchScalarGridSpec(
        num_scalar_prefetch=n_prefetch,
        grid=grid,
        in_specs=in_specs,
        out_specs=out_spec,
    )

    # VMEM budget: double-buffered (x + out) f32 tiles + f32 intermediates
    # + weight + params, with headroom; clamped so it is valid on v7x (64 MiB
    # physical) as well as v5e/v6e (128 MiB).
    tile_bytes = tm * D * 4
    w_bytes = D * D * jnp.dtype(w.dtype).itemsize
    budget = 8 * tile_bytes + 2 * w_bytes + 8 * D * 4 + (1 << 20)
    vmem_limit = int(min(max(budget, 32 << 20), 64 << 20))

    cost = pl.CostEstimate(
        flops=2 * m_pad * D * D,
        transcendentals=m_pad,                           # one rsqrt per row
        bytes_accessed=2 * m_pad * D * 4 + w_bytes,
    )

    call = pl.pallas_call(
        kernel,
        out_shape=jax.ShapeDtypeStruct((m_pad, D), x.dtype),
        grid_spec=grid_spec,
        compiler_params=pltpu.CompilerParams(
            dimension_semantics=("parallel",),
            vmem_limit_bytes=vmem_limit,
        ),
        cost_estimate=cost,
    )

    args = (xf, w, b.reshape(1, D), gamma.reshape(1, D), beta.reshape(1, D))
    if use_dropout:
        out = call(jnp.array([seed], dtype=jnp.int32), *args)
    else:
        out = call(*args)

    return out[:M].reshape(B, S, D)


if __name__ == "__main__":
    # Small shapes consistent with the module: batch=2, seq=8, d_model=32
    B, S, D = 2, 8, 32
    key = jax.random.PRNGKey(0)
    kx, kw, kb = jax.random.split(key, 3)

    x = jax.random.normal(kx, (B, S, D), dtype=jnp.float32)
    # Deterministic synthetic parameters (not a checkpoint load)
    w = jax.random.normal(kw, (D, D), dtype=jnp.float32) * (1.0 / np.sqrt(D))
    b = jax.random.normal(kb, (D,), dtype=jnp.float32) * 0.01
    gamma = jnp.ones((D,), dtype=jnp.float32)   # nn.LayerNorm default weight
    beta = jnp.zeros((D,), dtype=jnp.float32)   # nn.LayerNorm default bias

    # Pure-JAX reference (eval mode: dropout == identity)
    sub = jnp.einsum("bsd,de->bse", x, w, precision=lax.Precision.HIGHEST) + b
    mean = jnp.mean(sub, axis=-1, keepdims=True)
    var = jnp.mean((sub - mean) ** 2, axis=-1, keepdims=True)
    ref = x + ((sub - mean) * lax.rsqrt(var + 1e-5) * gamma + beta)

    # 1) Eval mode, full-f32 MXU path: tight check.
    out = residual_connection_layer_norm(x, w, b, gamma, beta,
                                         p=0.1, training=False)
    out = jax.block_until_ready(out)
    np.testing.assert_allclose(np.asarray(out), np.asarray(ref),
                               rtol=2e-5, atol=2e-5)

    # 2) Eval mode, bf16 MXU operands / f32 accumulation: loose check.
    out_bf16 = residual_connection_layer_norm(x, w, b, gamma, beta,
                                              p=0.1, training=False,
                                              mxu_dtype=jnp.bfloat16)
    out_bf16 = jax.block_until_ready(out_bf16)
    np.testing.assert_allclose(np.asarray(out_bf16), np.asarray(ref),
                               rtol=5e-2, atol=1e-1)

    # 3) Training mode (TPU hardware PRNG dropout; not bit-identical to the
    #    PyTorch RNG stream).  pltpu.prng_* has no CPU/interpret lowering,
    #    so only exercise this on a real TPU backend.
    if jax.default_backend() == "tpu":
        out_train = residual_connection_layer_norm(
            x, w, b, gamma, beta, p=0.1, training=True, seed=1234)
        out_train = jax.block_until_ready(out_train)
        assert out_train.shape == (B, S, D)
        assert bool(jnp.all(jnp.isfinite(out_train)))

    print("KERNEL_OK")
</pallas_src>

<mosaic_0001>
module attributes {stable_mosaic.version = 11 : i64} {
  func.func @_kernel_eval(%arg0: i32, %arg1: memref<16x32xf32, #tpu.memory_space<vmem>>, %arg2: memref<32x32xf32, #tpu.memory_space<vmem>>, %arg3: memref<1x32xf32, #tpu.memory_space<vmem>>, %arg4: memref<1x32xf32, #tpu.memory_space<vmem>>, %arg5: memref<1x32xf32, #tpu.memory_space<vmem>>, %arg6: memref<16x32xf32, #tpu.memory_space<vmem>>) attributes {dimension_semantics = [#tpu.dimension_semantics<parallel>], iteration_bounds = array<i64: 1>, scalar_prefetch = 0 : i64, scratch_operands = 0 : i64, tpu.core_type = #tpu.core_type<tc>, window_params = [{transform_indices = @transform_0, window_bounds = array<i64: 16, 32>}, {pipeline_mode = #tpu.pipeline_mode<synchronous>, transform_indices = @transform_1, window_bounds = array<i64: 32, 32>}, {pipeline_mode = #tpu.pipeline_mode<synchronous>, transform_indices = @transform_2, window_bounds = array<i64: 1, 32>}, {pipeline_mode = #tpu.pipeline_mode<synchronous>, transform_indices = @transform_3, window_bounds = array<i64: 1, 32>}, {pipeline_mode = #tpu.pipeline_mode<synchronous>, transform_indices = @transform_4, window_bounds = array<i64: 1, 32>}, {transform_indices = @transform_5, window_bounds = array<i64: 16, 32>}]} {
    %c0 = arith.constant 0 : index
    %c0_0 = arith.constant 0 : index
    %0 = vector.load %arg1[%c0, %c0_0] : memref<16x32xf32, #tpu.memory_space<vmem>>, vector<16x32xf32>
    %c0_1 = arith.constant 0 : index
    %c0_2 = arith.constant 0 : index
    %1 = vector.load %arg1[%c0_1, %c0_2] : memref<16x32xf32, #tpu.memory_space<vmem>>, vector<16x32xf32>
    %c0_3 = arith.constant 0 : index
    %c0_4 = arith.constant 0 : index
    %2 = vector.load %arg2[%c0_3, %c0_4] : memref<32x32xf32, #tpu.memory_space<vmem>>, vector<32x32xf32>
    %cst = arith.constant dense<0.000000e+00> : vector<16x32xf32>
    %3 = tpu.matmul %1, %2, %cst {dimension_numbers = #tpu.dot_dimension_numbers<[1], [0], [0], [1], [0, 0, 1, 1], [], []>} : vector<16x32xf32>, vector<32x32xf32>, vector<16x32xf32> -> vector<16x32xf32>
    %c0_5 = arith.constant 0 : index
    %c0_6 = arith.constant 0 : index
    %4 = vector.load %arg3[%c0_5, %c0_6] : memref<1x32xf32, #tpu.memory_space<vmem>>, vector<1x32xf32>
    %5 = vector.broadcast %4 : vector<1x32xf32> to vector<16x32xf32>
    %6 = arith.addf %3, %5 : vector<16x32xf32>
    %cst_7 = arith.constant dense<0.000000e+00> : vector<16xf32>
    %7 = vector.multi_reduction <add>, %6, %cst_7 [1] : vector<16x32xf32> to vector<16xf32>
    %8 = vector.shape_cast %7 : vector<16xf32> to vector<16x1xf32>
    %cst_8 = arith.constant 3.200000e+01 : f32
    %9 = vector.broadcast %cst_8 : f32 to vector<16x1xf32>
    %10 = arith.divf %8, %9 : vector<16x1xf32>
    %11 = vector.broadcast %10 : vector<16x1xf32> to vector<16x32xf32>
    %12 = arith.subf %6, %11 : vector<16x32xf32>
    %13 = arith.mulf %12, %12 : vector<16x32xf32>
    %cst_9 = arith.constant dense<0.000000e+00> : vector<16xf32>
    %14 = vector.multi_reduction <add>, %13, %cst_9 [1] : vector<16x32xf32> to vector<16xf32>
    %15 = vector.shape_cast %14 : vector<16xf32> to vector<16x1xf32>
    %cst_10 = arith.constant 3.200000e+01 : f32
    %16 = vector.broadcast %cst_10 : f32 to vector<16x1xf32>
    %17 = arith.divf %15, %16 : vector<16x1xf32>
    %cst_11 = arith.constant 9.99999974E-6 : f32
    %18 = vector.broadcast %cst_11 : f32 to vector<16x1xf32>
    %19 = arith.addf %17, %18 : vector<16x1xf32>
    %20 = math.rsqrt %19 : vector<16x1xf32>
    %21 = vector.broadcast %20 : vector<16x1xf32> to vector<16x32xf32>
    %22 = arith.mulf %12, %21 : vector<16x32xf32>
    %c0_12 = arith.constant 0 : index
    %c0_13 = arith.constant 0 : index
    %23 = vector.load %arg4[%c0_12, %c0_13] : memref<1x32xf32, #tpu.memory_space<vmem>>, vector<1x32xf32>
    %24 = vector.broadcast %23 : vector<1x32xf32> to vector<16x32xf32>
    %25 = arith.mulf %22, %24 : vector<16x32xf32>
    %c0_14 = arith.constant 0 : index
    %c0_15 = arith.constant 0 : index
    %26 = vector.load %arg5[%c0_14, %c0_15] : memref<1x32xf32, #tpu.memory_space<vmem>>, vector<1x32xf32>
    %27 = vector.broadcast %26 : vector<1x32xf32> to vector<16x32xf32>
    %28 = arith.addf %25, %27 : vector<16x32xf32>
    %29 = arith.addf %0, %28 : vector<16x32xf32>
    %c0_16 = arith.constant 0 : index
    %c0_17 = arith.constant 0 : index
    %30 = vector.load %arg6[%c0_16, %c0_17] : memref<16x32xf32, #tpu.memory_space<vmem>>, vector<16x32xf32>
    tpu.vector_store %arg6[%c0_16, %c0_17], %29 {strides = array<i32>} : memref<16x32xf32, #tpu.memory_space<vmem>>, vector<16x32xf32>,
    return
  }
  func.func @transform_0(%arg0: i32) -> (i32, i32) {
    %c0_i32 = arith.constant 0 : i32
    %c0_i32_0 = arith.constant 0 : i32
    return %arg0, %c0_i32 : i32, i32
  }
  func.func @transform_1(%arg0: i32) -> (i32, i32) {
    %c0_i32 = arith.constant 0 : i32
    %c0_i32_0 = arith.constant 0 : i32
    %c0_i32_1 = arith.constant 0 : i32
    return %c0_i32, %c0_i32_0 : i32, i32
  }
  func.func @transform_2(%arg0: i32) -> (i32, i32) {
    %c0_i32 = arith.constant 0 : i32
    %c0_i32_0 = arith.constant 0 : i32
    %c0_i32_1 = arith.constant 0 : i32
    return %c0_i32, %c0_i32_0 : i32, i32
  }
  func.func @transform_3(%arg0: i32) -> (i32, i32) {
    %c0_i32 = arith.constant 0 : i32
    %c0_i32_0 = arith.constant 0 : i32
    %c0_i32_1 = arith.constant 0 : i32
    return %c0_i32, %c0_i32_0 : i32, i32
  }
  func.func @transform_4(%arg0: i32) -> (i32, i32) {
    %c0_i32 = arith.constant 0 : i32
    %c0_i32_0 = arith.constant 0 : i32
    %c0_i32_1 = arith.constant 0 : i32
    return %c0_i32, %c0_i32_0 : i32, i32
  }
  func.func @transform_5(%arg0: i32) -> (i32, i32) {
    %c0_i32 = arith.constant 0 : i32
    %c0_i32_0 = arith.constant 0 : i32
    return %arg0, %c0_i32 : i32, i32
  }
}

</mosaic_0001>

<llo_original>
// kernel: tpu_custom_call.1
$region0: #{tpu_custom_call.1}
  #allocation0 [shape = 'u32[]', space=smem, size = 0x4, offset = 0x4, fixed_abs, tag = 'smem constant byte address 0x4 - core index']
  #allocation1 [shape = 'u32[72,128]{1,0:T(1,128)}', space=vmem, size = 0x9000, scoped, tag = 'internal scratch']
  %s0 = inlined_call_operand.hbm [shape: f32[16,32], index: 0, kind: input, shape index: {}]
  %s1 = inlined_call_operand.hbm [shape: f32[32,32], index: 1, kind: input, shape index: {}]
  %s2 = inlined_call_operand.vmem [shape: f32[1,32], index: 2, kind: input, shape index: {}]
  %s3 = inlined_call_operand.vmem [shape: f32[1,32], index: 3, kind: input, shape index: {}]
  %s4 = inlined_call_operand.vmem [shape: f32[1,32], index: 4, kind: input, shape index: {}]
  %s5 = inlined_call_operand.hbm [shape: f32[16,32], index: 5, kind: output, shape index: {}]
  %s6 = sld [smem:[#allocation0]]
  $region38: #{tpu_custom_call.1} parent=0
    _
  %s8 = ssub.s32 1, %s6
  %s9 = scalar_select 0, %s8, %s6
  $region1: #{tpu_custom_call.1} parent=0
    #allocation2 [shape = 'u8[8192]{0}', space=vmem, size = 0x2000, scoped, tag = 'input window, operand 0, single buffered']
    #allocation3 [shape = 's32[1]{0}', space=sflag, size = 0x4, scoped, tag = 'scoped memory for tpu_custom_call.1']
    #allocation4 [shape = 's32[1]{0}', space=sflag, size = 0x4, scoped, tag = 'scoped memory for tpu_custom_call.1']
    #allocation5 [shape = 'u8[16384]{0}', space=vmem, size = 0x4000, scoped, tag = 'input window, operand 1, single buffered']
    #allocation6 [shape = 's32[1]{0}', space=sflag, size = 0x4, scoped, tag = 'scoped memory for tpu_custom_call.1']
    #allocation7 [shape = 'u8[8192]{0}', space=vmem, size = 0x2000, scoped, tag = 'output window, operand 0, single buffered']
    %10 = vsyncpa [#allocation3], 0
    %11 = vsyncpa [#allocation6], 0
    %12 = vsyncpa [#allocation4], 0
    // Predicated region
    $region2: #{tpu_custom_call.1} parent=1 // pred_check
      _
    $region3: #{tpu_custom_call.1} parent=1 // pred_check_branch
      %14 = sbr.rel (0) target = $region5
    $region4: #{tpu_custom_call.1} parent=1 // pred_region
      %16 = vsyncadd [#allocation3], 0
      %s17 = sshll.u32 %s0, 4
      %s18 = int_to_ptr.hbm [resolvable:$true] %s17
      %s19 = sshll.u32 [#allocation2], 4
      %s20 = int_to_ptr.vmem [resolvable:$true] %s19
      %25 = dma.hbm_to_vmem [thread:$0]  %s18, 256, %s20, [#allocation3], 128, 128, 8
    $region5: #{tpu_custom_call.1} parent=1 // pred_fallthru
      _
    // Predicated region
    $region6: #{tpu_custom_call.1} parent=1 // pred_check
      _
    $region7: #{tpu_custom_call.1} parent=1 // pred_check_branch
      %27 = sbr.rel (0) target = $region9
    $region8: #{tpu_custom_call.1} parent=1 // pred_region
      %29 = vsyncadd [#allocation6], 0
      %s30 = sshll.u32 %s1, 4
      %s31 = int_to_ptr.hbm [resolvable:$true] %s30
      %s32 = sshll.u32 [#allocation5], 4
      %s33 = int_to_ptr.vmem [resolvable:$true] %s32
      %38 = dma.hbm_to_vmem [thread:$0]  %s31, 512, %s33, [#allocation6], 128, 128, 8
    $region9: #{tpu_custom_call.1} parent=1 // pred_fallthru
      _
    // Predicated region
    $region10: #{tpu_custom_call.1} parent=1 // pred_check
      _
    $region11: #{tpu_custom_call.1} parent=1 // pred_check_branch
      %40 = sbr.rel (0) target = $region13
    $region12: #{tpu_custom_call.1} parent=1 // pred_region
      _
    $region13: #{tpu_custom_call.1} parent=1 // pred_fallthru
      _
    // Predicated region
    $region14: #{tpu_custom_call.1} parent=1 // pred_check
      _
    $region15: #{tpu_custom_call.1} parent=1 // pred_check_branch
      %42 = sbr.rel (0) target = $region17
    $region16: #{tpu_custom_call.1} parent=1 // pred_region
      _
    $region17: #{tpu_custom_call.1} parent=1 // pred_fallthru
      _
    // Predicated region
    $region18: #{tpu_custom_call.1} parent=1 // pred_check
      _
    $region19: #{tpu_custom_call.1} parent=1 // pred_check_branch
      %44 = sbr.rel (0) target = $region21
    $region20: #{tpu_custom_call.1} parent=1 // pred_region
      _
    $region21: #{tpu_custom_call.1} parent=1 // pred_fallthru
      _
    // Predicated region
    $region22: #{tpu_custom_call.1} parent=1 // pred_check
      _
    $region23: #{tpu_custom_call.1} parent=1 // pred_check_branch
      %46 = sbr.rel (0) target = $region25
    $region24: #{tpu_custom_call.1} parent=1 // pred_region
      %48 = dma.done [#allocation3], 256
    $region25: #{tpu_custom_call.1} parent=1 // pred_fallthru
      _
    // Predicated region
    $region26: #{tpu_custom_call.1} parent=1 // pred_check
      _
    $region27: #{tpu_custom_call.1} parent=1 // pred_check_branch
      %50 = sbr.rel (0) target = $region29
    $region28: #{tpu_custom_call.1} parent=1 // pred_region
      %52 = dma.done [#allocation6], 512
    $region29: #{tpu_custom_call.1} parent=1 // pred_fallthru
      _
    %v53 = vld [vmem:[#allocation2] sm:$0xff]
    %v54 = vld [vmem:[#allocation2 + $0x8] sm:$0xff]
    %v55 = vld [vmem:[#allocation5] sm:$0xff]
    %v56 = vld [vmem:[#allocation5 + $0x8] sm:$0xff]
    %v57 = vld [vmem:[#allocation5 + $0x10] sm:$0xff]
    %v58 = vld [vmem:[#allocation5 + $0x18] sm:$0xff]
    %v59 = vld [vmem:[%s2] sm:$0x1]
    %v61 = vperm.slane %v59, 0
    %vm63 = vcmask 261120
    %v65 = vsel %vm63, %v53, 0
    %v68 = vsel %vm63, %v54, 0
    %70 = vmatpush.msra.mxu0 0.0
    %71 = vmatpush.msra.mxu0 0.0
    %72 = vmatpush.msra.mxu0 0.0
    %73 = vmatpush.msra.mxu0 0.0
    %74 = vmatpush.msra.mxu0 0.0
    %75 = vmatpush.msra.mxu0 0.0
    %76 = vmatpush.msra.mxu0 0.0
    %77 = vmatpush.msra.mxu0 0.0
    %78 = vmatpush.msra.mxu0 0.0
    %79 = vmatpush.msra.mxu0 0.0
    %80 = vmatpush.msra.mxu0 0.0
    %81 = vmatpush.msra.mxu0 0.0
    %82 = vmatpush.msra.mxu0 %v58
    %83 = vmatpush.msra.mxu0 %v57
    %84 = vmatpush.msra.mxu0 %v56
    %85 = vmatpush.msra.mxu0 %v55
    %86 = vmatmul.f32.gmra.mxu0 %v65
    %v87 = vpop.f32.mrf.mxu0
    %v88 = vadd.f32 %v61, %v87
    %89 = vmatmul.f32.gmra.mxu0 %v68
    %v90 = vpop.f32.mrf.mxu0
    %v91 = vadd.f32 %v61, %v90
    %92 = vdwg.mxu0
    %v93 = vsel %vm63, %v88, 0.0
    %94 = vadd.xlane.f32.xlu0 %v93
    %v95 = vpop.xlane.xlu0 %94
    %v96 = vsel %vm63, %v91, 0.0
    %97 = vadd.xlane.f32.xlu0 %v96
    %v98 = vpop.xlane.xlu0 %97
    %v99 = vrcp.pop 32.0
    %v100 = vmul.f32 32.0, %v99
    %v101 = vsub.f32 1.0, %v100
    %v102 = vmul.f32 %v99, %v101
    %v103 = vadd.f32 %v99, %v102
    %vm104 = vweird.f32 %v99
    %v105 = vsel %vm104, %v99, %v103
    %v106 = vmul.f32 %v95, %v105
    %v107 = vmul.f32 %v98, %v105
    %v108 = vsub.f32 %v88, %v106
    %v109 = vsub.f32 %v91, %v107
    %v110 = vmul.f32 %v108, %v108
    %v111 = vmul.f32 %v109, %v109
    %v112 = vsel %vm63, %v110, 0.0
    %113 = vadd.xlane.f32.xlu0 %v112
    %v114 = vpop.xlane.xlu0 %113
    %v115 = vsel %vm63, %v111, 0.0
    %116 = vadd.xlane.f32.xlu0 %v115
    %v117 = vpop.xlane.xlu0 %116
    %v118 = vmul.f32 %v114, %v105
    %v119 = vmul.f32 %v117, %v105
    %v120 = vadd.f32 %v118, 1e-05
    %v121 = vadd.f32 %v119, 1e-05
    %v122 = vrsqrt.pop %v120
    %v123 = vmul.f32 %v122, %v120
    %v124 = vmul.f32 %v123, %v122
    %v125 = vmul.f32 0.5, %v124
    %v126 = vsub.f32 1.5, %v125
    %v127 = vmul.f32 %v122, %v126
    %vm128 = vweird.f32 %v120
    %vm129 = vweird.f32 %v122
    %vm130 = vmor %vm128, %vm129
    %v131 = vsel %vm130, %v122, %v127
    %v132 = vrsqrt.pop %v121
    %v133 = vmul.f32 %v132, %v121
    %v134 = vmul.f32 %v133, %v132
    %v135 = vmul.f32 0.5, %v134
    %v136 = vsub.f32 1.5, %v135
    %v137 = vmul.f32 %v132, %v136
    %vm138 = vweird.f32 %v121
    %vm139 = vweird.f32 %v132
    %vm140 = vmor %vm138, %vm139
    %v141 = vsel %vm140, %v132, %v137
    %v142 = vmul.f32 %v108, %v131
    %v143 = vmul.f32 %v109, %v141
    %v144 = vld [vmem:[%s3] sm:$0x1]
    %v146 = vperm.slane %v144, 0
    %v148 = vmul.f32 %v142, %v146
    %v149 = vmul.f32 %v143, %v146
    %v150 = vld [vmem:[%s4] sm:$0x1]
    %v152 = vperm.slane %v150, 0
    %v154 = vadd.f32 %v148, %v152
    %v155 = vadd.f32 %v149, %v152
    %v156 = vadd.f32 %v53, %v154
    %v157 = vadd.f32 %v54, %v155
    %158 = vst.msk [vmem:[#allocation7] sm:$0xff] %vm63, %v156
    %159 = vst.msk [vmem:[#allocation7 + $0x8] sm:$0xff] %vm63, %v157
    // Predicated region
    $region30: #{tpu_custom_call.1} parent=1 // pred_check
      _
    $region31: #{tpu_custom_call.1} parent=1 // pred_check_branch
      %161 = sbr.rel (0) target = $region33
    $region32: #{tpu_custom_call.1} parent=1 // pred_region
      %163 = vsyncadd [#allocation4], 0
      %s164 = sshll.u32 [#allocation7], 4
      %s165 = int_to_ptr.vmem [resolvable:$true] %s164
      %s166 = sshll.u32 %s5, 4
      %s167 = int_to_ptr.hbm [resolvable:$true] %s166
      %172 = dma.vmem_to_hbm [thread:$0]  %s165, 256, %s167, [#allocation4], 128, 128, 8
    $region33: #{tpu_custom_call.1} parent=1 // pred_fallthru
      _
    // Predicated region
    $region34: #{tpu_custom_call.1} parent=1 // pred_check
      _
    $region35: #{tpu_custom_call.1} parent=1 // pred_check_branch
      %174 = sbr.rel (0) target = $region37
    $region36: #{tpu_custom_call.1} parent=1 // pred_region
      %176 = dma.done [#allocation4], 256
    $region37: #{tpu_custom_call.1} parent=1 // pred_fallthru
      _
    %177 = vsyncpa [#allocation3], 1
    %178 = vsyncpa [#allocation6], 1
    %179 = vsyncpa [#allocation4], 1

</llo_original>
